<compile_context>
chip_gen: v7x
topology: tpu7x:2x2x1
jax: 0.10.0
libtpu: 0.0.40
codegen_flags: <defaults>
</compile_context>

<pallas_src>
import numpy as np
import jax
import jax.numpy as jnp
from jax.experimental import pallas as pl
from jax.experimental.pallas import tpu as pltpu  # noqa: F401  (TPU backend)

# ---- shapes (module defaults: input_dim=100, out_dim=256) -----------------
B       = 16       # batch
DIN     = 100      # input_dim
DIN_PAD = 128      # zero-padded K (lane-dense)
DOUT    = 256      # out_dim (multiple of 128 -> unmasked lane-dense stores)
EPS     = 1e-5     # nn.BatchNorm2d default eps


# ---------------------------------------------------------------------------
# Fused kernel: conv1(1x1, BN folded) -> ReLU -> conv2(1x1).  One grid step,
# everything resident in VMEM.
#   x_ref   : (B, DIN_PAD)    f32
#   w1_ref  : (DIN_PAD, DOUT) bf16   (BN scale folded in, zero-padded rows)
#   bias_ref: (2, DOUT)       f32    row 0 = folded conv1 bias, row 1 = conv2 bias
#   w2_ref  : (DOUT, DOUT)    bf16
#   o_ref   : (B, DOUT)       f32
# ---------------------------------------------------------------------------
def _fused_kernel(x_ref, w1_ref, bias_ref, w2_ref, o_ref):
    x = x_ref[...].astype(jnp.bfloat16)                          # (B, DIN_PAD)

    # conv1 (1x1) with BatchNorm folded in  ==  x @ W1' + b1'
    h = jnp.dot(x, w1_ref[...], preferred_element_type=jnp.float32)
    h = h + bias_ref[0:1, :]                                     # f32 bias add

    # ReLU (f32 on VPU)
    h = jnp.maximum(h, 0.0)

    # conv2 (1x1)  ==  h @ W2 + b2
    o_ref[...] = (jnp.dot(h.astype(jnp.bfloat16), w2_ref[...],
                          preferred_element_type=jnp.float32)
                  + bias_ref[1:2, :])


# ---------------------------------------------------------------------------
# Wrapper-side parameter preparation (one-time):
#   * fold eval-mode BN into conv1:  W1' = W1 * scale,  b1' = (b1 - mu)*scale + beta
#   * zero-pad K from DIN to DIN_PAD
#   * cast matmul weights to bf16
#   * pack the two bias vectors into one (2, DOUT) f32 array
# ---------------------------------------------------------------------------
def prepare_params(raw):
    scale = raw['bn_g'] * jax.lax.rsqrt(raw['bn_var'] + EPS)          # (1, DOUT)
    w1_f = raw['w1'] * scale                                          # (DIN, DOUT)
    b1_f = (raw['b1'] - raw['bn_mean']) * scale + raw['bn_b']         # (1, DOUT)
    w1_pad = jnp.zeros((DIN_PAD, DOUT), jnp.float32).at[:DIN, :].set(w1_f)
    return dict(
        w1=w1_pad.astype(jnp.bfloat16),
        w2=raw['w2'].astype(jnp.bfloat16),
        bias=jnp.concatenate([b1_f, raw['b2']], axis=0).astype(jnp.float32),
    )


def feature_trans_forward(x, fused):
    b, din = x.shape
    assert din == DIN
    x_pad = jnp.pad(x, ((0, 0), (0, DIN_PAD - DIN)))                  # (b, DIN_PAD)
    full = lambda i: (0, 0)
    return pl.pallas_call(
        _fused_kernel,
        out_shape=jax.ShapeDtypeStruct((b, DOUT), jnp.float32),
        grid=(1,),                                  # single step: whole problem fits VMEM
        in_specs=[
            pl.BlockSpec((b, DIN_PAD), full),       # x (whole batch)
            pl.BlockSpec((DIN_PAD, DOUT), full),    # W1' (bf16, BN folded)
            pl.BlockSpec((2, DOUT), full),          # packed biases
            pl.BlockSpec((DOUT, DOUT), full),       # W2 (bf16)
        ],
        out_specs=pl.BlockSpec((b, DOUT), full),
    )(x_pad, fused['w1'], fused['bias'], fused['w2'])


# ---------------------------------------------------------------------------
# Deterministic synthetic parameters (raw PyTorch-equivalent layout, but with
# weights stored as (in_features, out_features)).
# ---------------------------------------------------------------------------
def init_params(key):
    ks = jax.random.split(key, 8)

    def nrm(k, shape, s=0.05):
        return s * jax.random.normal(k, shape, jnp.float32)

    return dict(
        w1=nrm(ks[0], (DIN, DOUT)),
        b1=nrm(ks[1], (1, DOUT), 0.01),
        bn_g=1.0 + nrm(ks[2], (1, DOUT), 0.1),
        bn_b=nrm(ks[3], (1, DOUT), 0.1),
        bn_mean=nrm(ks[4], (1, DOUT), 0.05),
        bn_var=1.0 + 0.2 * jax.random.uniform(ks[5], (1, DOUT), jnp.float32),
        w2=nrm(ks[6], (DOUT, DOUT)),
        b2=nrm(ks[7], (1, DOUT), 0.01),
    )


# ---------------------------------------------------------------------------
# References.
#   * reference_bf16: mirrors the kernel's dtype choices exactly (bf16 matmul
#     operands, f32 accumulate) -> tight tolerance.
#   * reference_f32 : pure f32 eval-mode module math -> loose tolerance
#     (bf16 weight cast changes numerics slightly).
# ---------------------------------------------------------------------------
def reference_bf16(x, fused):
    x_pad = jnp.pad(x, ((0, 0), (0, DIN_PAD - DIN))).astype(jnp.bfloat16)
    h = jnp.dot(x_pad, fused['w1'], preferred_element_type=jnp.float32)
    h = jnp.maximum(h + fused['bias'][0:1, :], 0.0)
    return (jnp.dot(h.astype(jnp.bfloat16), fused['w2'],
                    preferred_element_type=jnp.float32)
            + fused['bias'][1:2, :])


def reference_f32(x, p):
    h = x @ p['w1'] + p['b1']
    h = (h - p['bn_mean']) * (p['bn_g'] * jax.lax.rsqrt(p['bn_var'] + EPS)) + p['bn_b']
    h = jnp.maximum(h, 0.0)
    return h @ p['w2'] + p['b2']


if __name__ == "__main__":
    key = jax.random.PRNGKey(0)
    kp, kx = jax.random.split(key)

    raw = init_params(kp)
    fused = prepare_params(raw)
    x = jax.random.normal(kx, (B, DIN), jnp.float32)   # input_feat (B, input_dim)

    fwd = jax.jit(feature_trans_forward)
    out = fwd(x, fused)
    out = jax.block_until_ready(out)
    assert out.shape == (B, DOUT)

    # Tight check against a reference with identical dtype choices.
    np.testing.assert_allclose(np.asarray(out), np.asarray(reference_bf16(x, fused)),
                               rtol=1e-3, atol=1e-3)
    # Loose check against pure-f32 module semantics (bf16 weight quantization).
    np.testing.assert_allclose(np.asarray(out), np.asarray(reference_f32(x, raw)),
                               rtol=5e-2, atol=5e-2)
    print("KERNEL_OK")
</pallas_src>

<mosaic_0001>
module attributes {stable_mosaic.version = 11 : i64} {
  func.func @_fused_kernel(%arg0: i32, %arg1: memref<16x128xf32, #tpu.memory_space<vmem>>, %arg2: memref<128x256xbf16, #tpu.memory_space<vmem>>, %arg3: memref<2x256xf32, #tpu.memory_space<vmem>>, %arg4: memref<256x256xbf16, #tpu.memory_space<vmem>>, %arg5: memref<16x256xf32, #tpu.memory_space<vmem>>) attributes {dimension_semantics = [#tpu.dimension_semantics<arbitrary>], iteration_bounds = array<i64: 1>, scalar_prefetch = 0 : i64, scratch_operands = 0 : i64, tpu.core_type = #tpu.core_type<tc>, window_params = [{pipeline_mode = #tpu.pipeline_mode<synchronous>, transform_indices = @transform_0, window_bounds = array<i64: 16, 128>}, {pipeline_mode = #tpu.pipeline_mode<synchronous>, transform_indices = @transform_1, window_bounds = array<i64: 128, 256>}, {pipeline_mode = #tpu.pipeline_mode<synchronous>, transform_indices = @transform_2, window_bounds = array<i64: 2, 256>}, {pipeline_mode = #tpu.pipeline_mode<synchronous>, transform_indices = @transform_3, window_bounds = array<i64: 256, 256>}, {pipeline_mode = #tpu.pipeline_mode<synchronous>, transform_indices = @transform_4, window_bounds = array<i64: 16, 256>}]} {
    %c0 = arith.constant 0 : index
    %c0_0 = arith.constant 0 : index
    %0 = vector.load %arg1[%c0, %c0_0] : memref<16x128xf32, #tpu.memory_space<vmem>>, vector<16x128xf32>
    %1 = arith.truncf %0 : vector<16x128xf32> to vector<16x128xbf16>
    %c0_1 = arith.constant 0 : index
    %c0_2 = arith.constant 0 : index
    %2 = vector.load %arg2[%c0_1, %c0_2] : memref<128x256xbf16, #tpu.memory_space<vmem>>, vector<128x256xbf16>
    %cst = arith.constant dense<0.000000e+00> : vector<16x256xf32>
    %3 = tpu.matmul %1, %2, %cst {dimension_numbers = #tpu.dot_dimension_numbers<[1], [0], [0], [1], [0, 0, 1, 1], [], []>} : vector<16x128xbf16>, vector<128x256xbf16>, vector<16x256xf32> -> vector<16x256xf32>
    %c0_3 = arith.constant 0 : index
    %c0_4 = arith.constant 0 : index
    %4 = vector.load %arg3[%c0_3, %c0_4] : memref<2x256xf32, #tpu.memory_space<vmem>>, vector<1x256xf32>
    %5 = vector.broadcast %4 : vector<1x256xf32> to vector<16x256xf32>
    %6 = arith.addf %3, %5 : vector<16x256xf32>
    %cst_5 = arith.constant 0.000000e+00 : f32
    %7 = vector.broadcast %cst_5 : f32 to vector<16x256xf32>
    %8 = arith.maximumf %6, %7 : vector<16x256xf32>
    %9 = arith.truncf %8 : vector<16x256xf32> to vector<16x256xbf16>
    %c0_6 = arith.constant 0 : index
    %c0_7 = arith.constant 0 : index
    %10 = vector.load %arg4[%c0_6, %c0_7] : memref<256x256xbf16, #tpu.memory_space<vmem>>, vector<256x256xbf16>
    %cst_8 = arith.constant dense<0.000000e+00> : vector<16x256xf32>
    %11 = tpu.matmul %9, %10, %cst_8 {dimension_numbers = #tpu.dot_dimension_numbers<[1], [0], [0], [1], [0, 0, 1, 1], [], []>} : vector<16x256xbf16>, vector<256x256xbf16>, vector<16x256xf32> -> vector<16x256xf32>
    %c1 = arith.constant 1 : index
    %c0_9 = arith.constant 0 : index
    %12 = vector.load %arg3[%c1, %c0_9] : memref<2x256xf32, #tpu.memory_space<vmem>>, vector<1x256xf32>
    %13 = vector.broadcast %12 : vector<1x256xf32> to vector<16x256xf32>
    %14 = arith.addf %11, %13 : vector<16x256xf32>
    %c0_10 = arith.constant 0 : index
    %c0_11 = arith.constant 0 : index
    %15 = vector.load %arg5[%c0_10, %c0_11] : memref<16x256xf32, #tpu.memory_space<vmem>>, vector<16x256xf32>
    tpu.vector_store %arg5[%c0_10, %c0_11], %14 {strides = array<i32>} : memref<16x256xf32, #tpu.memory_space<vmem>>, vector<16x256xf32>,
    return
  }
  func.func @transform_0(%arg0: i32) -> (i32, i32) {
    %c0_i32 = arith.constant 0 : i32
    %c0_i32_0 = arith.constant 0 : i32
    %c0_i32_1 = arith.constant 0 : i32
    return %c0_i32, %c0_i32_0 : i32, i32
  }
  func.func @transform_1(%arg0: i32) -> (i32, i32) {
    %c0_i32 = arith.constant 0 : i32
    %c0_i32_0 = arith.constant 0 : i32
    %c0_i32_1 = arith.constant 0 : i32
    return %c0_i32, %c0_i32_0 : i32, i32
  }
  func.func @transform_2(%arg0: i32) -> (i32, i32) {
    %c0_i32 = arith.constant 0 : i32
    %c0_i32_0 = arith.constant 0 : i32
    %c0_i32_1 = arith.constant 0 : i32
    return %c0_i32, %c0_i32_0 : i32, i32
  }
  func.func @transform_3(%arg0: i32) -> (i32, i32) {
    %c0_i32 = arith.constant 0 : i32
    %c0_i32_0 = arith.constant 0 : i32
    %c0_i32_1 = arith.constant 0 : i32
    return %c0_i32, %c0_i32_0 : i32, i32
  }
  func.func @transform_4(%arg0: i32) -> (i32, i32) {
    %c0_i32 = arith.constant 0 : i32
    %c0_i32_0 = arith.constant 0 : i32
    %c0_i32_1 = arith.constant 0 : i32
    return %c0_i32, %c0_i32_0 : i32, i32
  }
}

</mosaic_0001>

<llo_original>
// kernel: feature_trans_forward.1
$region0: #{feature_trans_forward.1}
  #allocation0 [shape = 'u32[]', space=smem, size = 0x4, offset = 0x4, fixed_abs, tag = 'smem constant byte address 0x4 - core index']
  #allocation1 [shape = 'u32[144,128]{1,0:T(1,128)}', space=vmem, size = 0x12000, scoped, tag = 'internal scratch']
  %s0 = inlined_call_operand.vmem [shape: f32[16,128], index: 0, kind: input, shape index: {}]
  %s1 = inlined_call_operand.hbm [shape: bf16[128,256], index: 1, kind: input, shape index: {}]
  %s2 = inlined_call_operand.vmem [shape: f32[2,256], index: 2, kind: input, shape index: {}]
  %s3 = inlined_call_operand.hbm [shape: bf16[256,256], index: 3, kind: input, shape index: {}]
  %s4 = inlined_call_operand.hbm [shape: f32[16,256], index: 4, kind: output, shape index: {}]
  %s5 = sld [smem:[#allocation0]]
  $region34: #{feature_trans_forward.1} parent=0
    _
  %s7 = ssub.s32 1, %s5
  %s8 = scalar_select 0, %s7, %s5
  $region1: #{feature_trans_forward.1} parent=0
    #allocation2 [shape = 'u8[65536]{0}', space=vmem, size = 0x10000, scoped, tag = 'input window, operand 1, single buffered']
    #allocation3 [shape = 's32[1]{0}', space=sflag, size = 0x4, scoped, tag = 'scoped memory for feature_trans_forward.1']
    #allocation4 [shape = 's32[1]{0}', space=sflag, size = 0x4, scoped, tag = 'scoped memory for feature_trans_forward.1']
    #allocation5 [shape = 'u8[131072]{0}', space=vmem, size = 0x20000, scoped, tag = 'input window, operand 3, single buffered']
    #allocation6 [shape = 's32[1]{0}', space=sflag, size = 0x4, scoped, tag = 'scoped memory for feature_trans_forward.1']
    #allocation7 [shape = 'u8[16384]{0}', space=vmem, size = 0x4000, scoped, tag = 'output window, operand 0, single buffered']
    %9 = vsyncpa [#allocation3], 0
    %10 = vsyncpa [#allocation6], 0
    %11 = vsyncpa [#allocation4], 0
    // Predicated region
    $region2: #{feature_trans_forward.1} parent=1 // pred_check
      _
    $region3: #{feature_trans_forward.1} parent=1 // pred_check_branch
      %13 = sbr.rel (0) target = $region5
    $region4: #{feature_trans_forward.1} parent=1 // pred_region
      _
    $region5: #{feature_trans_forward.1} parent=1 // pred_fallthru
      _
    // Predicated region
    $region6: #{feature_trans_forward.1} parent=1 // pred_check
      _
    $region7: #{feature_trans_forward.1} parent=1 // pred_check_branch
      %15 = sbr.rel (0) target = $region9
    $region8: #{feature_trans_forward.1} parent=1 // pred_region
      %s17 = ssub.s32 2048, 2048
      %18 = vsyncadd [#allocation3], %s17
      %s19 = sshll.u32 [#allocation2], 4
      %s20 = int_to_ptr.vmem [resolvable:$true] %s19
      %25 = dma.hbm_to_vmem [thread:$0]  %s1, 2048, %s20, [#allocation3], 128, 128, 8
    $region9: #{feature_trans_forward.1} parent=1 // pred_fallthru
      _
    // Predicated region
    $region10: #{feature_trans_forward.1} parent=1 // pred_check
      _
    $region11: #{feature_trans_forward.1} parent=1 // pred_check_branch
      %27 = sbr.rel (0) target = $region13
    $region12: #{feature_trans_forward.1} parent=1 // pred_region
      _
    $region13: #{feature_trans_forward.1} parent=1 // pred_fallthru
      _
    // Predicated region
    $region14: #{feature_trans_forward.1} parent=1 // pred_check
      _
    $region15: #{feature_trans_forward.1} parent=1 // pred_check_branch
      %29 = sbr.rel (0) target = $region17
    $region16: #{feature_trans_forward.1} parent=1 // pred_region
      %s31 = ssub.s32 4096, 4096
      %32 = vsyncadd [#allocation6], %s31
      %s33 = sshll.u32 [#allocation5], 4
      %s34 = int_to_ptr.vmem [resolvable:$true] %s33
      %39 = dma.hbm_to_vmem [thread:$0]  %s3, 4096, %s34, [#allocation6], 128, 128, 8
    $region17: #{feature_trans_forward.1} parent=1 // pred_fallthru
      _
    // Predicated region
    $region18: #{feature_trans_forward.1} parent=1 // pred_check
      _
    $region19: #{feature_trans_forward.1} parent=1 // pred_check_branch
      %41 = sbr.rel (0) target = $region21
    $region20: #{feature_trans_forward.1} parent=1 // pred_region
      %42 = dma.done [#allocation3], 2048
    $region21: #{feature_trans_forward.1} parent=1 // pred_fallthru
      _
    // Predicated region
    $region22: #{feature_trans_forward.1} parent=1 // pred_check
      _
    $region23: #{feature_trans_forward.1} parent=1 // pred_check_branch
      %44 = sbr.rel (0) target = $region25
    $region24: #{feature_trans_forward.1} parent=1 // pred_region
      %45 = dma.done [#allocation6], 4096
    $region25: #{feature_trans_forward.1} parent=1 // pred_fallthru
      _
    %v47 = vld [vmem:[%s0] sm:$0xff]
    %v48 = vld [vmem:[%s0 + $0x8] sm:$0xff]
    %v49 = vpack.c.bf16 %v48, %v47
    %v50 = vld [vmem:[#allocation2] sm:$0xff]
    %v51 = vld [vmem:[#allocation2 + $0x8] sm:$0xff]
    %v52 = vld [vmem:[#allocation2 + $0x10] sm:$0xff]
    %v53 = vld [vmem:[#allocation2 + $0x18] sm:$0xff]
    %v54 = vld [vmem:[#allocation2 + $0x20] sm:$0xff]
    %v55 = vld [vmem:[#allocation2 + $0x28] sm:$0xff]
    %v56 = vld [vmem:[#allocation2 + $0x30] sm:$0xff]
    %v57 = vld [vmem:[#allocation2 + $0x38] sm:$0xff]
    %v58 = vld [vmem:[#allocation2 + $0x40] sm:$0xff]
    %v59 = vld [vmem:[#allocation2 + $0x48] sm:$0xff]
    %v60 = vld [vmem:[#allocation2 + $0x50] sm:$0xff]
    %v61 = vld [vmem:[#allocation2 + $0x58] sm:$0xff]
    %v62 = vld [vmem:[#allocation2 + $0x60] sm:$0xff]
    %v63 = vld [vmem:[#allocation2 + $0x68] sm:$0xff]
    %v64 = vld [vmem:[#allocation2 + $0x70] sm:$0xff]
    %v65 = vld [vmem:[#allocation2 + $0x78] sm:$0xff]
    %v66 = vld [vmem:[%s2] ss:$2 sm:$0x3]
    %v68 = vlaneseq
    %v69 = vshrl.u32 %v68, 7
    %v70 = vsub.s32 0, %v69
    %v71 = vrot.slane %v66, %v70
    %v72 = vlaneseq
    %v73 = vshrl.u32 %v72, 7
    %v74 = vsub.s32 1, %v73
    %v75 = vrot.slane %v66, %v74
    %v94 = vunpack.c.l.b16 %v50
    %v95 = vunpack.c.h.b16 %v50
    %v96 = vunpack.c.l.b16 %v51
    %v97 = vunpack.c.h.b16 %v51
    %v98 = vunpack.c.l.b16 %v52
    %v99 = vunpack.c.h.b16 %v52
    %v100 = vunpack.c.l.b16 %v53
    %v101 = vunpack.c.h.b16 %v53
    %v102 = vunpack.c.l.b16 %v54
    %v103 = vunpack.c.h.b16 %v54
    %v104 = vunpack.c.l.b16 %v55
    %v105 = vunpack.c.h.b16 %v55
    %v106 = vunpack.c.l.b16 %v56
    %v107 = vunpack.c.h.b16 %v56
    %v108 = vunpack.c.l.b16 %v57
    %v109 = vunpack.c.h.b16 %v57
    %v110 = vunpack.c.l.b16 %v58
    %v111 = vunpack.c.h.b16 %v58
    %v112 = vunpack.c.l.b16 %v59
    %v113 = vunpack.c.h.b16 %v59
    %v114 = vunpack.c.l.b16 %v60
    %v115 = vunpack.c.h.b16 %v60
    %v116 = vunpack.c.l.b16 %v61
    %v117 = vunpack.c.h.b16 %v61
    %v118 = vunpack.c.l.b16 %v62
    %v119 = vunpack.c.h.b16 %v62
    %v120 = vunpack.c.l.b16 %v63
    %v121 = vunpack.c.h.b16 %v63
    %v122 = vunpack.c.l.b16 %v64
    %v123 = vunpack.c.h.b16 %v64
    %v124 = vunpack.c.l.b16 %v65
    %v125 = vunpack.c.h.b16 %v65
    %v126 = vpack.c.b16 %v96, %v94
    %v127 = vpack.c.b16 %v97, %v95
    %v128 = vpack.c.b16 %v100, %v98
    %v129 = vpack.c.b16 %v101, %v99
    %v130 = vpack.c.b16 %v104, %v102
    %v131 = vpack.c.b16 %v105, %v103
    %v132 = vpack.c.b16 %v108, %v106
    %v133 = vpack.c.b16 %v109, %v107
    %v134 = vpack.c.b16 %v112, %v110
    %v135 = vpack.c.b16 %v113, %v111
    %v136 = vpack.c.b16 %v116, %v114
    %v137 = vpack.c.b16 %v117, %v115
    %v138 = vpack.c.b16 %v120, %v118
    %v139 = vpack.c.b16 %v121, %v119
    %v140 = vpack.c.b16 %v124, %v122
    %v141 = vpack.c.b16 %v125, %v123
    %158 = vmatprep.subr.bf16.mxu0 %v127
    %159 = vmatpush1.bf16.msra.mxu0 %v126
    %160 = vmatprep.subr.bf16.mxu0 %v129
    %161 = vmatpush1.bf16.msra.mxu0 %v128
    %162 = vmatprep.subr.bf16.mxu0 %v131
    %163 = vmatpush1.bf16.msra.mxu0 %v130
    %164 = vmatprep.subr.bf16.mxu0 %v133
    %165 = vmatpush1.bf16.msra.mxu0 %v132
    %166 = vmatprep.subr.bf16.mxu0 %v135
    %167 = vmatpush1.bf16.msra.mxu0 %v134
    %168 = vmatprep.subr.bf16.mxu0 %v137
    %169 = vmatpush1.bf16.msra.mxu0 %v136
    %170 = vmatprep.subr.bf16.mxu0 %v139
    %171 = vmatpush1.bf16.msra.mxu0 %v138
    %172 = vmatprep.subr.bf16.mxu0 %v141
    %173 = vmatpush1.bf16.msra.mxu0 %v140
    %174 = vmatprep.subr.bf16.mxu0 0
    %175 = vmatpush1.bf16.msra.mxu0 0
    %176 = vmatprep.subr.bf16.mxu0 0
    %177 = vmatpush1.bf16.msra.mxu0 0
    %178 = vmatprep.subr.bf16.mxu0 0
    %179 = vmatpush1.bf16.msra.mxu0 0
    %180 = vmatprep.subr.bf16.mxu0 0
    %181 = vmatpush1.bf16.msra.mxu0 0
    %182 = vmatprep.subr.bf16.mxu0 0
    %183 = vmatpush1.bf16.msra.mxu0 0
    %184 = vmatprep.subr.bf16.mxu0 0
    %185 = vmatpush1.bf16.msra.mxu0 0
    %186 = vmatprep.subr.bf16.mxu0 0
    %187 = vmatpush1.bf16.msra.mxu0 0
    %188 = vmatprep.subr.bf16.mxu0 0
    %189 = vmatpush1.bf16.msra.mxu0 0
    %190 = vmatprep.mubr.bf16.mxu0 0
    %191 = vmatmul.mubr.bf16.gmra.mrb[0].mxu0 %v49
    %v192 = vpop.f32.mrb[0].mxu0
    %v193 = vadd.f32 %v71, %v192
    %v194 = vpop.f32.mrb[0].mxu0
    %v195 = vadd.f32 %v75, %v194
    %v196 = vpop.f32.mrb[0].mxu0
    %v197 = vadd.f32 %v71, %v196
    %v198 = vpop.f32.mrb[0].mxu0
    %v199 = vadd.f32 %v75, %v198
    %200 = vdwg.mxu0
    %v201 = vmax.f32 %v193, 0.0
    %v202 = vmax.f32 %v195, 0.0
    %v203 = vmax.f32 %v197, 0.0
    %v204 = vmax.f32 %v199, 0.0
    %v205 = vpack.c.bf16 %v203, %v201
    %v206 = vpack.c.bf16 %v204, %v202
    %v207 = vld [vmem:[#allocation5] sm:$0xff]
    %v208 = vld [vmem:[#allocation5 + $0x8] sm:$0xff]
    %v209 = vld [vmem:[#allocation5 + $0x10] sm:$0xff]
    %v210 = vld [vmem:[#allocation5 + $0x18] sm:$0xff]
    %v211 = vld [vmem:[#allocation5 + $0x20] sm:$0xff]
    %v212 = vld [vmem:[#allocation5 + $0x28] sm:$0xff]
    %v213 = vld [vmem:[#allocation5 + $0x30] sm:$0xff]
    %v214 = vld [vmem:[#allocation5 + $0x38] sm:$0xff]
    %v215 = vld [vmem:[#allocation5 + $0x40] sm:$0xff]
    %v216 = vld [vmem:[#allocation5 + $0x48] sm:$0xff]
    %v217 = vld [vmem:[#allocation5 + $0x50] sm:$0xff]
    %v218 = vld [vmem:[#allocation5 + $0x58] sm:$0xff]
    %v219 = vld [vmem:[#allocation5 + $0x60] sm:$0xff]
    %v220 = vld [vmem:[#allocation5 + $0x68] sm:$0xff]
    %v221 = vld [vmem:[#allocation5 + $0x70] sm:$0xff]
    %v222 = vld [vmem:[#allocation5 + $0x78] sm:$0xff]
    %v223 = vld [vmem:[#allocation5 + $0x80] sm:$0xff]
    %v224 = vld [vmem:[#allocation5 + $0x88] sm:$0xff]
    %v225 = vld [vmem:[#allocation5 + $0x90] sm:$0xff]
    %v226 = vld [vmem:[#allocation5 + $0x98] sm:$0xff]
    %v227 = vld [vmem:[#allocation5 + $0xa0] sm:$0xff]
    %v228 = vld [vmem:[#allocation5 + $0xa8] sm:$0xff]
    %v229 = vld [vmem:[#allocation5 + $0xb0] sm:$0xff]
    %v230 = vld [vmem:[#allocation5 + $0xb8] sm:$0xff]
    %v231 = vld [vmem:[#allocation5 + $0xc0] sm:$0xff]
    %v232 = vld [vmem:[#allocation5 + $0xc8] sm:$0xff]
    %v233 = vld [vmem:[#allocation5 + $0xd0] sm:$0xff]
    %v234 = vld [vmem:[#allocation5 + $0xd8] sm:$0xff]
    %v235 = vld [vmem:[#allocation5 + $0xe0] sm:$0xff]
    %v236 = vld [vmem:[#allocation5 + $0xe8] sm:$0xff]
    %v237 = vld [vmem:[#allocation5 + $0xf0] sm:$0xff]
    %v238 = vld [vmem:[#allocation5 + $0xf8] sm:$0xff]
    %s239 = scalar_lea.vmem %s2, 1
    %v240 = vld [vmem:[%s239] ss:$2 sm:$0x3]
    %v242 = vlaneseq
    %v243 = vshrl.u32 %v242, 7
    %v244 = vsub.s32 0, %v243
    %v245 = vrot.slane %v240, %v244
    %v246 = vlaneseq
    %v247 = vshrl.u32 %v246, 7
    %v248 = vsub.s32 1, %v247
    %v249 = vrot.slane %v240, %v248
    %v284 = vunpack.c.l.b16 %v207
    %v285 = vunpack.c.h.b16 %v207
    %v286 = vunpack.c.l.b16 %v208
    %v287 = vunpack.c.h.b16 %v208
    %v288 = vunpack.c.l.b16 %v209
    %v289 = vunpack.c.h.b16 %v209
    %v290 = vunpack.c.l.b16 %v210
    %v291 = vunpack.c.h.b16 %v210
    %v292 = vunpack.c.l.b16 %v211
    %v293 = vunpack.c.h.b16 %v211
    %v294 = vunpack.c.l.b16 %v212
    %v295 = vunpack.c.h.b16 %v212
    %v296 = vunpack.c.l.b16 %v213
    %v297 = vunpack.c.h.b16 %v213
    %v298 = vunpack.c.l.b16 %v214
    %v299 = vunpack.c.h.b16 %v214
    %v300 = vunpack.c.l.b16 %v215
    %v301 = vunpack.c.h.b16 %v215
    %v302 = vunpack.c.l.b16 %v216
    %v303 = vunpack.c.h.b16 %v216
    %v304 = vunpack.c.l.b16 %v217
    %v305 = vunpack.c.h.b16 %v217
    %v306 = vunpack.c.l.b16 %v218
    %v307 = vunpack.c.h.b16 %v218
    %v308 = vunpack.c.l.b16 %v219
    %v309 = vunpack.c.h.b16 %v219
    %v310 = vunpack.c.l.b16 %v220
    %v311 = vunpack.c.h.b16 %v220
    %v312 = vunpack.c.l.b16 %v221
    %v313 = vunpack.c.h.b16 %v221
    %v314 = vunpack.c.l.b16 %v222
    %v315 = vunpack.c.h.b16 %v222
    %v316 = vunpack.c.l.b16 %v223
    %v317 = vunpack.c.h.b16 %v223
    %v318 = vunpack.c.l.b16 %v224
    %v319 = vunpack.c.h.b16 %v224
    %v320 = vunpack.c.l.b16 %v225
    %v321 = vunpack.c.h.b16 %v225
    %v322 = vunpack.c.l.b16 %v226
    %v323 = vunpack.c.h.b16 %v226
    %v324 = vunpack.c.l.b16 %v227
    %v325 = vunpack.c.h.b16 %v227
    %v326 = vunpack.c.l.b16 %v228
    %v327 = vunpack.c.h.b16 %v228
    %v328 = vunpack.c.l.b16 %v229
    %v329 = vunpack.c.h.b16 %v229
    %v330 = vunpack.c.l.b16 %v230
    %v331 = vunpack.c.h.b16 %v230
    %v332 = vunpack.c.l.b16 %v231
    %v333 = vunpack.c.h.b16 %v231
    %v334 = vunpack.c.l.b16 %v232
    %v335 = vunpack.c.h.b16 %v232
    %v336 = vunpack.c.l.b16 %v233
    %v337 = vunpack.c.h.b16 %v233
    %v338 = vunpack.c.l.b16 %v234
    %v339 = vunpack.c.h.b16 %v234
    %v340 = vunpack.c.l.b16 %v235
    %v341 = vunpack.c.h.b16 %v235
    %v342 = vunpack.c.l.b16 %v236
    %v343 = vunpack.c.h.b16 %v236
    %v344 = vunpack.c.l.b16 %v237
    %v345 = vunpack.c.h.b16 %v237
    %v346 = vunpack.c.l.b16 %v238
    %v347 = vunpack.c.h.b16 %v238
    %v348 = vpack.c.b16 %v286, %v284
    %v349 = vpack.c.b16 %v287, %v285
    %v350 = vpack.c.b16 %v290, %v288
    %v351 = vpack.c.b16 %v291, %v289
    %v352 = vpack.c.b16 %v294, %v292
    %v353 = vpack.c.b16 %v295, %v293
    %v354 = vpack.c.b16 %v298, %v296
    %v355 = vpack.c.b16 %v299, %v297
    %v356 = vpack.c.b16 %v302, %v300
    %v357 = vpack.c.b16 %v303, %v301
    %v358 = vpack.c.b16 %v306, %v304
    %v359 = vpack.c.b16 %v307, %v305
    %v360 = vpack.c.b16 %v310, %v308
    %v361 = vpack.c.b16 %v311, %v309
    %v362 = vpack.c.b16 %v314, %v312
    %v363 = vpack.c.b16 %v315, %v313
    %v364 = vpack.c.b16 %v318, %v316
    %v365 = vpack.c.b16 %v319, %v317
    %v366 = vpack.c.b16 %v322, %v320
    %v367 = vpack.c.b16 %v323, %v321
    %v368 = vpack.c.b16 %v326, %v324
    %v369 = vpack.c.b16 %v327, %v325
    %v370 = vpack.c.b16 %v330, %v328
    %v371 = vpack.c.b16 %v331, %v329
    %v372 = vpack.c.b16 %v334, %v332
    %v373 = vpack.c.b16 %v335, %v333
    %v374 = vpack.c.b16 %v338, %v336
    %v375 = vpack.c.b16 %v339, %v337
    %v376 = vpack.c.b16 %v342, %v340
    %v377 = vpack.c.b16 %v343, %v341
    %v378 = vpack.c.b16 %v346, %v344
    %v379 = vpack.c.b16 %v347, %v345
    %412 = vmatprep.subr.bf16.mxu0 %v349
    %413 = vmatpush1.bf16.msra.mxu0 %v348
    %414 = vmatprep.subr.bf16.mxu0 %v351
    %415 = vmatpush1.bf16.msra.mxu0 %v350
    %416 = vmatprep.subr.bf16.mxu0 %v353
    %417 = vmatpush1.bf16.msra.mxu0 %v352
    %418 = vmatprep.subr.bf16.mxu0 %v355
    %419 = vmatpush1.bf16.msra.mxu0 %v354
    %420 = vmatprep.subr.bf16.mxu0 %v357
    %421 = vmatpush1.bf16.msra.mxu0 %v356
    %422 = vmatprep.subr.bf16.mxu0 %v359
    %423 = vmatpush1.bf16.msra.mxu0 %v358
    %424 = vmatprep.subr.bf16.mxu0 %v361
    %425 = vmatpush1.bf16.msra.mxu0 %v360
    %426 = vmatprep.subr.bf16.mxu0 %v363
    %427 = vmatpush1.bf16.msra.mxu0 %v362
    %428 = vmatprep.subr.bf16.mxu0 %v365
    %429 = vmatpush1.bf16.msra.mxu0 %v364
    %430 = vmatprep.subr.bf16.mxu0 %v367
    %431 = vmatpush1.bf16.msra.mxu0 %v366
    %432 = vmatprep.subr.bf16.mxu0 %v369
    %433 = vmatpush1.bf16.msra.mxu0 %v368
    %434 = vmatprep.subr.bf16.mxu0 %v371
    %435 = vmatpush1.bf16.msra.mxu0 %v370
    %436 = vmatprep.subr.bf16.mxu0 %v373
    %437 = vmatpush1.bf16.msra.mxu0 %v372
    %438 = vmatprep.subr.bf16.mxu0 %v375
    %439 = vmatpush1.bf16.msra.mxu0 %v374
    %440 = vmatprep.subr.bf16.mxu0 %v377
    %441 = vmatpush1.bf16.msra.mxu0 %v376
    %442 = vmatprep.subr.bf16.mxu0 %v379
    %443 = vmatpush1.bf16.msra.mxu0 %v378
    %444 = vmatprep.mubr.bf16.mxu0 %v206
    %445 = vmatmul.mubr.bf16.gmra.mrb[0].mxu0 %v205
    %v446 = vpop.f32.mrb[0].mxu0
    %v447 = vadd.f32 %v245, %v446
    %v448 = vpop.f32.mrb[0].mxu0
    %v449 = vadd.f32 %v249, %v448
    %v450 = vpop.f32.mrb[0].mxu0
    %v451 = vadd.f32 %v245, %v450
    %v452 = vpop.f32.mrb[0].mxu0
    %v453 = vadd.f32 %v249, %v452
    %454 = vdwg.mxu0
    %455 = vst [vmem:[#allocation7] sm:$0xff] %v447
    %456 = vst [vmem:[#allocation7 + $0x8] sm:$0xff] %v449
    %457 = vst [vmem:[#allocation7 + $0x10] sm:$0xff] %v451
    %458 = vst [vmem:[#allocation7 + $0x18] sm:$0xff] %v453
    // Predicated region
    $region26: #{feature_trans_forward.1} parent=1 // pred_check
      _
    $region27: #{feature_trans_forward.1} parent=1 // pred_check_branch
      %460 = sbr.rel (0) target = $region29
    $region28: #{feature_trans_forward.1} parent=1 // pred_region
      %s462 = ssub.s32 512, 512
      %463 = vsyncadd [#allocation4], %s462
      %s464 = sshll.u32 [#allocation7], 4
      %s465 = int_to_ptr.vmem [resolvable:$true] %s464
      %470 = dma.vmem_to_hbm [thread:$0]  %s465, 512, %s4, [#allocation4], 256, 256, 16
    $region29: #{feature_trans_forward.1} parent=1 // pred_fallthru
      _
    // Predicated region
    $region30: #{feature_trans_forward.1} parent=1 // pred_check
      _
    $region31: #{feature_trans_forward.1} parent=1 // pred_check_branch
      %472 = sbr.rel (0) target = $region33
    $region32: #{feature_trans_forward.1} parent=1 // pred_region
      %473 = dma.done [#allocation4], 512
    $region33: #{feature_trans_forward.1} parent=1 // pred_fallthru
      _
    %474 = vsyncpa [#allocation3], 1
    %475 = vsyncpa [#allocation6], 1
    %476 = vsyncpa [#allocation4], 1

</llo_original>
